<compile_context>
chip_gen: v6e
topology: v6e:2x2x1
jax: 0.10.0
libtpu: 0.0.40
codegen_flags: <defaults>
</compile_context>

<pallas_src>
import functools

import jax
import jax.numpy as jnp
from jax.experimental import pallas as pl
from jax.experimental.pallas import tpu as pltpu


def _round_up(x, m):
    return (x + m - 1) // m * m


# ---------------------------------------------------------------------------
# Kernels
# ---------------------------------------------------------------------------

def _log_softmax_rows(logits):
    # Numerically-stable log_softmax over the label axis (PyTorch dim=1).
    m = jnp.max(logits, axis=-1, keepdims=True)
    shifted = logits - m
    lse = jnp.log(jnp.sum(jnp.exp(shifted), axis=-1, keepdims=True))
    return shifted - lse


def bow_kernel_single(x_ref, w_ref, b_ref, o_ref):
    # Whole vocab in one tile: no accumulator scratch, no masking.
    # x_ref: (Bt, V), w_ref: (L, V) in nn.Linear layout, b_ref: (1, L).
    logits = jax.lax.dot_general(
        x_ref[...], w_ref[...],
        dimension_numbers=(((1,), (1,)), ((), ())),
        preferred_element_type=jnp.float32,
    )
    logits = logits + b_ref[...].astype(jnp.float32)
    o_ref[...] = _log_softmax_rows(logits).astype(o_ref.dtype)


def bow_kernel_multik(x_ref, w_ref, b_ref, o_ref, acc_ref, *,
                      vt, v_total, mask_tail, resident_w):
    # x_ref: (Bt, Vt) bow counts tile
    # w_ref: (L, Vp) resident weight OR (L, Vt) streamed chunk (nn.Linear layout)
    # b_ref: (1, L) bias, resident
    # o_ref: (Bt, L) log-probabilities
    # acc_ref: (Bt, L) f32 accumulator, persistent across the vocab axis
    k = pl.program_id(1)

    @pl.when(k == 0)
    def _init():
        acc_ref[...] = jnp.zeros_like(acc_ref)

    x = x_ref[...]
    if mask_tail:
        # The last vocab tile reads past V (undefined data); zero those columns
        # explicitly so garbage/NaN never enters the reduction.
        valid = v_total - k * vt
        col = jax.lax.broadcasted_iota(jnp.int32, x.shape, 1)
        x = jnp.where(col < valid, x, jnp.zeros_like(x))

    if resident_w:
        w = w_ref[:, pl.ds(pl.multiple_of(k * vt, 128), vt)]
    else:
        w = w_ref[...]

    # Contract on the vocab axis of both (no materialized weight transpose).
    acc_ref[...] += jax.lax.dot_general(
        x, w, dimension_numbers=(((1,), (1,)), ((), ())),
        preferred_element_type=jnp.float32,
    )

    @pl.when(k == pl.num_programs(1) - 1)
    def _finalize():
        logits = acc_ref[...] + b_ref[...].astype(jnp.float32)
        o_ref[...] = _log_softmax_rows(logits).astype(o_ref.dtype)


# ---------------------------------------------------------------------------
# Wrapper
# ---------------------------------------------------------------------------

def bow_classifier_forward(bow_vec, weight, bias, *, block_b=512, block_v=4096,
                           max_resident_weight_bytes=8 * 1024 * 1024):
    """Forward pass of BoWClassifier.

    bow_vec: (B, V) counts; weight: (L, V) as in nn.Linear; bias: (L,).
    Returns (B, L) float32 log-probabilities.
    """
    B, V = bow_vec.shape
    L = weight.shape[0]

    # Batch tile: multiple of 8; force >= 2 tiles whenever B >= 16 so the
    # "parallel" batch axis can shard across v7x's two TensorCores.
    if B >= 16:
        bt = _round_up(min(block_b, _round_up(pl.cdiv(B, 2), 8)), 8)
    else:
        bt = B  # full (unpadded) dim is always a legal block shape
    nb = pl.cdiv(B, bt)

    # Vocab tile: full V if it fits one block, else a 128-multiple.
    if V <= block_v:
        vt = V
    else:
        n = pl.cdiv(V, block_v)
        vt = _round_up(pl.cdiv(V, n), 128)
    nk = pl.cdiv(V, vt)
    vp = nk * vt

    b2d = bias.reshape(1, L).astype(jnp.float32)
    x_bytes = jnp.dtype(bow_vec.dtype).itemsize
    w_bytes = jnp.dtype(weight.dtype).itemsize

    cost = pl.CostEstimate(
        flops=2 * B * V * L,
        transcendentals=B * L,
        bytes_accessed=B * V * x_bytes + L * V * w_bytes + B * L * 4 + L * 4,
    )

    if nk == 1:
        # --- Specialized single-vocab-tile path (no accumulator, no masking) ---
        vmem_need = (2 * bt * vt * x_bytes + L * vt * w_bytes
                     + 2 * bt * L * 4 + 2 * L * 4)
        return pl.pallas_call(
            bow_kernel_single,
            out_shape=jax.ShapeDtypeStruct((B, L), jnp.float32),
            grid_spec=pltpu.PrefetchScalarGridSpec(
                num_scalar_prefetch=0,
                grid=(nb,),
                in_specs=[
                    pl.BlockSpec((bt, vt), lambda i: (i, 0)),   # bow counts
                    pl.BlockSpec((L, vt), lambda i: (0, 0)),    # weight, resident
                    pl.BlockSpec((1, L), lambda i: (0, 0)),     # bias, resident
                ],
                out_specs=pl.BlockSpec((bt, L), lambda i: (i, 0)),
            ),
            compiler_params=pltpu.CompilerParams(
                dimension_semantics=("parallel",),
                vmem_limit_bytes=max(32 * 1024 * 1024, int(vmem_need * 1.3)),
            ),
            cost_estimate=cost,
        )(bow_vec, weight, b2d)

    # --- Multi-tile vocab reduction path ---
    w = weight
    if vp != V:
        # Zero-pad only the tiny weight so in-kernel vocab slices are in bounds;
        # the padded columns pair with x columns masked to zero in the kernel.
        w = jnp.pad(w, ((0, 0), (0, vp - V)))

    resident_w = (L * vp * w_bytes) <= max_resident_weight_bytes
    mask_tail = (V % vt) != 0

    if resident_w:
        w_spec = pl.BlockSpec((L, vp), lambda i, k: (0, 0))   # one DMA, resident
        w_vmem = L * vp * w_bytes
    else:
        w_spec = pl.BlockSpec((L, vt), lambda i, k: (0, k))   # streamed per chunk
        w_vmem = 2 * L * vt * w_bytes

    vmem_need = (2 * bt * vt * x_bytes + w_vmem + 2 * bt * L * 4
                 + bt * L * 4 + 2 * L * 4)

    kernel = functools.partial(
        bow_kernel_multik, vt=vt, v_total=V,
        mask_tail=mask_tail, resident_w=resident_w)

    return pl.pallas_call(
        kernel,
        out_shape=jax.ShapeDtypeStruct((B, L), jnp.float32),
        grid_spec=pltpu.PrefetchScalarGridSpec(
            num_scalar_prefetch=0,
            grid=(nb, nk),
            in_specs=[
                pl.BlockSpec((bt, vt), lambda i, k: (i, k)),   # bow counts
                w_spec,                                        # weight
                pl.BlockSpec((1, L), lambda i, k: (0, 0)),     # bias, resident
            ],
            out_specs=pl.BlockSpec((bt, L), lambda i, k: (i, 0)),
            scratch_shapes=[pltpu.VMEM((bt, L), jnp.float32)],
        ),
        compiler_params=pltpu.CompilerParams(
            dimension_semantics=("parallel", "arbitrary"),
            vmem_limit_bytes=max(32 * 1024 * 1024, int(vmem_need * 1.3)),
        ),
        cost_estimate=cost,
    )(bow_vec, w, b2d)


def reference_forward(bow_vec, weight, bias):
    logits = bow_vec @ weight.T + bias
    return jax.nn.log_softmax(logits, axis=-1)


if __name__ == "__main__":
    key = jax.random.PRNGKey(0)
    ks = jax.random.split(key, 9)

    # --- Test 1: toy shapes consistent with the module (single-tile path). ---
    num_labels, vocab_size, batch = 4, 32, 2
    bound = 1.0 / jnp.sqrt(jnp.float32(vocab_size))
    weight = jax.random.uniform(ks[0], (num_labels, vocab_size),
                                minval=-bound, maxval=bound, dtype=jnp.float32)
    bias = jax.random.uniform(ks[1], (num_labels,),
                              minval=-bound, maxval=bound, dtype=jnp.float32)
    bow_vec = jax.random.randint(ks[2], (batch, vocab_size), 0, 5).astype(jnp.float32)

    out = jax.block_until_ready(bow_classifier_forward(bow_vec, weight, bias))
    ref = reference_forward(bow_vec, weight, bias)
    assert out.shape == (batch, num_labels)
    assert jnp.allclose(out, ref, atol=1e-5, rtol=1e-5), "mismatch (toy)"

    # --- Test 2: single vocab tile, multiple/ragged batch tiles. ---
    B1, V1, L1 = 20, 64, 4
    w1 = jax.random.uniform(ks[3], (L1, V1), minval=-0.1, maxval=0.1, dtype=jnp.float32)
    b1 = jax.random.uniform(ks[4], (L1,), minval=-0.1, maxval=0.1, dtype=jnp.float32)
    x1 = jax.random.randint(ks[5], (B1, V1), 0, 5).astype(jnp.float32)
    out1 = jax.block_until_ready(bow_classifier_forward(x1, w1, b1))
    ref1 = reference_forward(x1, w1, b1)
    assert out1.shape == (B1, L1)
    assert jnp.allclose(out1, ref1, atol=1e-4, rtol=1e-4), "mismatch (ragged batch)"

    # --- Test 3: multi-tile vocab reduction, ragged vocab tail, resident weight. ---
    B2, V2, L2 = 20, 300, 5
    w2 = jax.random.uniform(ks[6], (L2, V2), minval=-0.1, maxval=0.1, dtype=jnp.float32)
    b2 = jax.random.uniform(ks[7], (L2,), minval=-0.1, maxval=0.1, dtype=jnp.float32)
    x2 = jax.random.randint(ks[8], (B2, V2), 0, 5).astype(jnp.float32)
    out2 = jax.block_until_ready(
        bow_classifier_forward(x2, w2, b2, block_b=8, block_v=128))
    ref2 = reference_forward(x2, w2, b2)
    assert out2.shape == (B2, L2)
    assert jnp.allclose(out2, ref2, atol=1e-4, rtol=1e-4), "mismatch (tiled, resident w)"

    # --- Test 4: same shapes, streamed-weight fallback path. ---
    out3 = jax.block_until_ready(
        bow_classifier_forward(x2, w2, b2, block_b=8, block_v=128,
                               max_resident_weight_bytes=0))
    assert jnp.allclose(out3, ref2, atol=1e-4, rtol=1e-4), "mismatch (tiled, streamed w)"

    print("KERNEL_OK")
</pallas_src>

<mosaic_0001>
module attributes {stable_mosaic.version = 11 : i64} {
  func.func @bow_kernel_single(%arg0: i32, %arg1: memref<2x32xf32, #tpu.memory_space<vmem>>, %arg2: memref<4x32xf32, #tpu.memory_space<vmem>>, %arg3: memref<1x4xf32, #tpu.memory_space<vmem>>, %arg4: memref<2x4xf32, #tpu.memory_space<vmem>>) attributes {dimension_semantics = [#tpu.dimension_semantics<parallel>], iteration_bounds = array<i64: 1>, scalar_prefetch = 0 : i64, scratch_operands = 0 : i64, tpu.core_type = #tpu.core_type<tc>, window_params = [{transform_indices = @transform_0, window_bounds = array<i64: 2, 32>}, {pipeline_mode = #tpu.pipeline_mode<synchronous>, transform_indices = @transform_1, window_bounds = array<i64: 4, 32>}, {pipeline_mode = #tpu.pipeline_mode<synchronous>, transform_indices = @transform_2, window_bounds = array<i64: 1, 4>}, {transform_indices = @transform_3, window_bounds = array<i64: 2, 4>}]} {
    %c0 = arith.constant 0 : index
    %c0_0 = arith.constant 0 : index
    %0 = vector.load %arg1[%c0, %c0_0] : memref<2x32xf32, #tpu.memory_space<vmem>>, vector<2x32xf32>
    %c0_1 = arith.constant 0 : index
    %c0_2 = arith.constant 0 : index
    %1 = vector.load %arg2[%c0_1, %c0_2] : memref<4x32xf32, #tpu.memory_space<vmem>>, vector<4x32xf32>
    %cst = arith.constant dense<0.000000e+00> : vector<2x4xf32>
    %2 = tpu.matmul %0, %1, %cst {dimension_numbers = #tpu.dot_dimension_numbers<[1], [1], [0], [0], [0, 0, 1, 0], [], []>} : vector<2x32xf32>, vector<4x32xf32>, vector<2x4xf32> -> vector<2x4xf32>
    %c0_3 = arith.constant 0 : index
    %c0_4 = arith.constant 0 : index
    %3 = vector.load %arg3[%c0_3, %c0_4] : memref<1x4xf32, #tpu.memory_space<vmem>>, vector<1x4xf32>
    %4 = vector.broadcast %3 : vector<1x4xf32> to vector<2x4xf32>
    %5 = arith.addf %2, %4 : vector<2x4xf32>
    %cst_5 = arith.constant dense<0xFF800000> : vector<2xf32>
    %6 = vector.multi_reduction <maximumf>, %5, %cst_5 [1] : vector<2x4xf32> to vector<2xf32>
    %7 = vector.shape_cast %6 : vector<2xf32> to vector<2x1xf32>
    %8 = vector.broadcast %7 : vector<2x1xf32> to vector<2x4xf32>
    %9 = arith.subf %5, %8 : vector<2x4xf32>
    %10 = math.exp %9 : vector<2x4xf32>
    %cst_6 = arith.constant dense<0.000000e+00> : vector<2xf32>
    %11 = vector.multi_reduction <add>, %10, %cst_6 [1] : vector<2x4xf32> to vector<2xf32>
    %12 = vector.shape_cast %11 : vector<2xf32> to vector<2x1xf32>
    %13 = math.log %12 : vector<2x1xf32>
    %14 = vector.broadcast %13 : vector<2x1xf32> to vector<2x4xf32>
    %15 = arith.subf %9, %14 : vector<2x4xf32>
    %c0_7 = arith.constant 0 : index
    %c0_8 = arith.constant 0 : index
    %16 = vector.load %arg4[%c0_7, %c0_8] : memref<2x4xf32, #tpu.memory_space<vmem>>, vector<2x4xf32>
    tpu.vector_store %arg4[%c0_7, %c0_8], %15 {strides = array<i32>} : memref<2x4xf32, #tpu.memory_space<vmem>>, vector<2x4xf32>,
    return
  }
  func.func @transform_0(%arg0: i32) -> (i32, i32) {
    %c0_i32 = arith.constant 0 : i32
    %c0_i32_0 = arith.constant 0 : i32
    return %arg0, %c0_i32 : i32, i32
  }
  func.func @transform_1(%arg0: i32) -> (i32, i32) {
    %c0_i32 = arith.constant 0 : i32
    %c0_i32_0 = arith.constant 0 : i32
    %c0_i32_1 = arith.constant 0 : i32
    return %c0_i32, %c0_i32_0 : i32, i32
  }
  func.func @transform_2(%arg0: i32) -> (i32, i32) {
    %c0_i32 = arith.constant 0 : i32
    %c0_i32_0 = arith.constant 0 : i32
    %c0_i32_1 = arith.constant 0 : i32
    return %c0_i32, %c0_i32_0 : i32, i32
  }
  func.func @transform_3(%arg0: i32) -> (i32, i32) {
    %c0_i32 = arith.constant 0 : i32
    %c0_i32_0 = arith.constant 0 : i32
    return %arg0, %c0_i32 : i32, i32
  }
}

</mosaic_0001>

<llo_original>
// kernel: tpu_custom_call.1
$region0: #{tpu_custom_call.1}
  #allocation0 [shape = 'u32[]', space=smem, size = 0x4, offset = 0x4, fixed_abs, tag = 'smem constant byte address 0x4 - core index']
  #allocation1 [shape = 'u32[144,128]{1,0:T(1,128)}', space=vmem, size = 0x12000, scoped, tag = 'internal scratch']
  %s0 = inlined_call_operand.hbm [shape: f32[2,32], index: 0, kind: input, shape index: {}]
  %s1 = inlined_call_operand.hbm [shape: f32[4,32], index: 1, kind: input, shape index: {}]
  %s2 = inlined_call_operand.vmem [shape: f32[1,4], index: 2, kind: input, shape index: {}]
  %s3 = inlined_call_operand.hbm [shape: f32[2,4], index: 3, kind: output, shape index: {}]
  %s4 = sld [smem:[#allocation0]]
  $region30: #{tpu_custom_call.1} parent=0
    _
  %s6 = ssub.s32 1, %s4
  %s7 = scalar_select 0, %s6, %s4
  $region1: #{tpu_custom_call.1} parent=0
    #allocation2 [shape = 'u8[1024]{0}', space=vmem, size = 0x400, scoped, tag = 'input window, operand 0, single buffered']
    #allocation3 [shape = 's32[1]{0}', space=sflag, size = 0x4, scoped, tag = 'scoped memory for tpu_custom_call.1']
    #allocation4 [shape = 's32[1]{0}', space=sflag, size = 0x4, scoped, tag = 'scoped memory for tpu_custom_call.1']
    #allocation5 [shape = 'u8[2048]{0}', space=vmem, size = 0x800, scoped, tag = 'input window, operand 1, single buffered']
    #allocation6 [shape = 's32[1]{0}', space=sflag, size = 0x4, scoped, tag = 'scoped memory for tpu_custom_call.1']
    #allocation7 [shape = 'u8[1024]{0}', space=vmem, size = 0x400, scoped, tag = 'output window, operand 0, single buffered']
    %8 = vsyncpa [#allocation3], 0
    %9 = vsyncpa [#allocation6], 0
    %10 = vsyncpa [#allocation4], 0
    // Predicated region
    $region2: #{tpu_custom_call.1} parent=1 // pred_check
      _
    $region3: #{tpu_custom_call.1} parent=1 // pred_check_branch
      %12 = sbr.rel (0) target = $region5
    $region4: #{tpu_custom_call.1} parent=1 // pred_region
      %s14 = ssub.s32 32, 32
      %15 = vsyncadd [#allocation3], %s14
      %s17 = sshll.u32 [#allocation2], 4
      %s18 = int_to_ptr.vmem [resolvable:$true] %s17
      %20 = dma.hbm_to_vmem [thread:$0]  %s0, 32, %s18, [#allocation3]
    $region5: #{tpu_custom_call.1} parent=1 // pred_fallthru
      _
    // Predicated region
    $region6: #{tpu_custom_call.1} parent=1 // pred_check
      _
    $region7: #{tpu_custom_call.1} parent=1 // pred_check_branch
      %22 = sbr.rel (0) target = $region9
    $region8: #{tpu_custom_call.1} parent=1 // pred_region
      %s24 = ssub.s32 64, 64
      %25 = vsyncadd [#allocation6], %s24
      %s27 = sshll.u32 [#allocation5], 4
      %s28 = int_to_ptr.vmem [resolvable:$true] %s27
      %30 = dma.hbm_to_vmem [thread:$0]  %s1, 64, %s28, [#allocation6]
    $region9: #{tpu_custom_call.1} parent=1 // pred_fallthru
      _
    // Predicated region
    $region10: #{tpu_custom_call.1} parent=1 // pred_check
      _
    $region11: #{tpu_custom_call.1} parent=1 // pred_check_branch
      %32 = sbr.rel (0) target = $region13
    $region12: #{tpu_custom_call.1} parent=1 // pred_region
      _
    $region13: #{tpu_custom_call.1} parent=1 // pred_fallthru
      _
    // Predicated region
    $region14: #{tpu_custom_call.1} parent=1 // pred_check
      _
    $region15: #{tpu_custom_call.1} parent=1 // pred_check_branch
      %34 = sbr.rel (0) target = $region17
    $region16: #{tpu_custom_call.1} parent=1 // pred_region
      %35 = dma.done [#allocation3], 32
    $region17: #{tpu_custom_call.1} parent=1 // pred_fallthru
      _
    // Predicated region
    $region18: #{tpu_custom_call.1} parent=1 // pred_check
      _
    $region19: #{tpu_custom_call.1} parent=1 // pred_check_branch
      %37 = sbr.rel (0) target = $region21
    $region20: #{tpu_custom_call.1} parent=1 // pred_region
      %38 = dma.done [#allocation6], 64
    $region21: #{tpu_custom_call.1} parent=1 // pred_fallthru
      _
    %v39 = vld [vmem:[#allocation2] sm:$0x3]
    %v40 = vld [vmem:[#allocation5] sm:$0xf]
    %v41 = vld [vmem:[%s2] sm:$0x1]
    %v43 = vlaneseq
    %v44 = vshrl.u32 %v43, 7
    %v45 = vsub.s32 0, %v44
    %v46 = vrot.slane %v41, %v45
    %vm48 = vcmask 261120
    %v50 = vsel %vm48, %v39, 0
    %v53 = vsel %vm48, %v40, 0
    %55 = vmatprep.subr.mxu0 0.0
    %56 = vmatpush1.xpose.msra.mxu0 0.0
    %57 = vmatprep.subr.mxu0 0.0
    %58 = vmatpush1.xpose.msra.mxu0 0.0
    %59 = vmatprep.subr.mxu0 0.0
    %60 = vmatpush1.xpose.msra.mxu0 0.0
    %61 = vmatprep.subr.mxu0 0.0
    %62 = vmatpush1.xpose.msra.mxu0 0.0
    %63 = vmatprep.subr.mxu0 0.0
    %64 = vmatpush1.xpose.msra.mxu0 0.0
    %65 = vmatprep.subr.mxu0 0.0
    %66 = vmatpush1.xpose.msra.mxu0 0.0
    %67 = vmatprep.subr.mxu0 0.0
    %68 = vmatpush1.xpose.msra.mxu0 0.0
    %69 = vmatprep.subr.mxu0 0.0
    %70 = vmatpush1.xpose.msra.mxu0 0.0
    %71 = vmatprep.subr.mxu0 0.0
    %72 = vmatpush1.xpose.msra.mxu0 0.0
    %73 = vmatprep.subr.mxu0 0.0
    %74 = vmatpush1.xpose.msra.mxu0 0.0
    %75 = vmatprep.subr.mxu0 0.0
    %76 = vmatpush1.xpose.msra.mxu0 0.0
    %77 = vmatprep.subr.mxu0 0.0
    %78 = vmatpush1.xpose.msra.mxu0 0.0
    %79 = vmatprep.subr.mxu0 0.0
    %80 = vmatpush1.xpose.msra.mxu0 0.0
    %81 = vmatprep.subr.mxu0 0.0
    %82 = vmatpush1.xpose.msra.mxu0 0.0
    %83 = vmatprep.subr.mxu0 0.0
    %84 = vmatpush1.xpose.msra.mxu0 0.0
    %85 = vmatprep.subr.mxu0 0.0
    %86 = vmatpush1.xpose.msra.mxu0 %v53
    %87 = vmatprep.subr.mxu0 0.0
    %88 = vmatpush2.xpose.msra.mxu0 0.0
    %89 = vmatprep.subr.mxu0 0.0
    %90 = vmatpush2.xpose.msra.mxu0 0.0
    %91 = vmatprep.subr.mxu0 0.0
    %92 = vmatpush2.xpose.msra.mxu0 0.0
    %93 = vmatprep.subr.mxu0 0.0
    %94 = vmatpush2.xpose.msra.mxu0 0.0
    %95 = vmatprep.subr.mxu0 0.0
    %96 = vmatpush2.xpose.msra.mxu0 0.0
    %97 = vmatprep.subr.mxu0 0.0
    %98 = vmatpush2.xpose.msra.mxu0 0.0
    %99 = vmatprep.subr.mxu0 0.0
    %100 = vmatpush2.xpose.msra.mxu0 0.0
    %101 = vmatprep.subr.mxu0 0.0
    %102 = vmatpush2.xpose.msra.mxu0 0.0
    %103 = vmatprep.subr.mxu0 0.0
    %104 = vmatpush2.xpose.msra.mxu0 0.0
    %105 = vmatprep.subr.mxu0 0.0
    %106 = vmatpush2.xpose.msra.mxu0 0.0
    %107 = vmatprep.subr.mxu0 0.0
    %108 = vmatpush2.xpose.msra.mxu0 0.0
    %109 = vmatprep.subr.mxu0 0.0
    %110 = vmatpush2.xpose.msra.mxu0 0.0
    %111 = vmatprep.subr.mxu0 0.0
    %112 = vmatpush2.xpose.msra.mxu0 0.0
    %113 = vmatprep.subr.mxu0 0.0
    %114 = vmatpush2.xpose.msra.mxu0 0.0
    %115 = vmatprep.subr.mxu0 0.0
    %116 = vmatpush2.xpose.msra.mxu0 0.0
    %117 = vmatprep.subr.mxu0 0.0
    %118 = vmatpush2.xpose.msra.mxu0 0.0
    %119 = vmatprep.mubr.f32.mxu0 0.0
    %120 = vmatmul.mubr.f32.gmra.mxu0 %v50
    %v121 = vpop.f32.mrf.mxu0
    %v122 = vadd.f32 %v46, %v121
    %v123 = vpop.f32.mrf.mxu0
    %124 = vdwg.mxu0
    %vm125 = vcmask 25600
    %v126 = vsel %vm125, %v122, -inf
    %127 = vmax.xlane.f32.xlu0 %v126
    %v128 = vpop.xlane.xlu0 %127
    %v129 = vsub.f32 %v122, %v128
    %v130 = vmul.f32 %v129, 1.442695
    %v131 = vpow.pop %v130
    %v132 = vsel %vm125, %v131, 0.0
    %133 = vadd.xlane.f32.xlu0 %v132
    %v134 = vpop.xlane.xlu0 %133
    %v135 = vlog2.pop %v134
    %v136 = vmul.f32 %v135, 0.6931472
    %v137 = vsub.f32 %v129, %v136
    %138 = vst.msk [vmem:[#allocation7] sm:$0x3] %vm125, %v137
    // Predicated region
    $region22: #{tpu_custom_call.1} parent=1 // pred_check
      _
    $region23: #{tpu_custom_call.1} parent=1 // pred_check_branch
      %140 = sbr.rel (0) target = $region25
    $region24: #{tpu_custom_call.1} parent=1 // pred_region
      %s142 = ssub.s32 32, 32
      %143 = vsyncadd [#allocation4], %s142
      %s145 = sshll.u32 [#allocation7], 4
      %s146 = int_to_ptr.vmem [resolvable:$true] %s145
      %148 = dma.vmem_to_hbm [thread:$0]  %s146, 32, %s3, [#allocation4]
    $region25: #{tpu_custom_call.1} parent=1 // pred_fallthru
      _
    // Predicated region
    $region26: #{tpu_custom_call.1} parent=1 // pred_check
      _
    $region27: #{tpu_custom_call.1} parent=1 // pred_check_branch
      %150 = sbr.rel (0) target = $region29
    $region28: #{tpu_custom_call.1} parent=1 // pred_region
      %151 = dma.done [#allocation4], 32
    $region29: #{tpu_custom_call.1} parent=1 // pred_fallthru
      _
    %152 = vsyncpa [#allocation3], 1
    %153 = vsyncpa [#allocation6], 1
    %154 = vsyncpa [#allocation4], 1

</llo_original>
